<compile_context>
chip_gen: v7x
topology: tpu7x:2x2x1
jax: 0.10.0
libtpu: 0.0.40
codegen_flags: <defaults>
</compile_context>

<pallas_src>
import jax
import jax.numpy as jnp
from jax.experimental import pallas as pl
from jax.experimental.pallas import tpu as pltpu

_BN_EPS = 1e-5
_LANES = 128      # output-feature dims padded to a multiple of this (lane-dense)
_SUBLANES = 8     # batch dim padded to a multiple of this
_CONTRACT = 16    # contraction dim only needs bf16 sublane packing (16), not 128


def _round_up(x, m):
    return ((x + m - 1) // m) * m


# ---------------------------------------------------------------------------
# Fused kernel factory: one kernel body runs the whole MLP forward with
# double-buffered weight streaming from HBM.
# refs layout: x, W_0..W_{L-1} (HBM), [gamma, beta], b_out, out, w_buf, sem
# ---------------------------------------------------------------------------
def _make_mlp_kernel(weight_shapes, num_hidden, n_valid, n_pad):
    num_layers = len(weight_shapes)
    has_bn = num_hidden > 0
    # Masking is only needed when padded batch rows could become nonzero, i.e.
    # after the first BN+ReLU when there is a *second* BN layer downstream.
    use_mask = (n_pad != n_valid) and num_hidden >= 2
    inv_n = 1.0 / float(n_valid)

    def kernel(*refs):
        x_ref = refs[0]
        w_hbm = refs[1:1 + num_layers]
        idx = 1 + num_layers
        if has_bn:
            gamma_ref = refs[idx]
            beta_ref = refs[idx + 1]
            idx += 2
        b_out_ref = refs[idx]
        out_ref = refs[idx + 1]
        w_buf = refs[idx + 2]          # VMEM scratch (2, max_r, max_c) bf16
        sem = refs[idx + 3]            # DMA semaphores (2,)

        def w_copy(layer, slot):
            r, c = weight_shapes[layer]
            return pltpu.make_async_copy(
                w_hbm[layer], w_buf.at[slot, :r, :c], sem.at[slot])

        # Prime the pipeline: fetch layer 0's weights immediately.
        w_copy(0, 0).start()

        if use_mask:
            rows = jax.lax.broadcasted_iota(jnp.int32, (n_pad, 1), 0)
            mask = (rows < n_valid).astype(jnp.float32)

        h = x_ref[...]                           # bf16 activations
        for i in range(num_layers):              # unrolled at trace time
            slot = i & 1
            if i + 1 < num_layers:               # prefetch next layer's weights
                w_copy(i + 1, 1 - slot).start()
            w_copy(i, slot).wait()
            r, c = weight_shapes[i]
            y = jnp.dot(h, w_buf[slot, :r, :c],
                        preferred_element_type=jnp.float32)
            if i < num_hidden:
                # BatchNorm1d (training-mode, biased var) + ReLU.
                # Hidden bias omitted: exactly cancelled by the mean subtraction.
                # One-pass stats: padded batch rows of y are guaranteed zero.
                sum_y = jnp.sum(y, axis=0, keepdims=True)
                sum_y2 = jnp.sum(y * y, axis=0, keepdims=True)
                mean = sum_y * inv_n
                var = jnp.maximum(sum_y2 * inv_n - mean * mean, 0.0)
                scale = gamma_ref[i:i + 1, :] * jax.lax.rsqrt(var + _BN_EPS)
                shift = beta_ref[i:i + 1, :] - mean * scale
                h_f32 = jnp.maximum(y * scale + shift, 0.0)
                if use_mask and i < num_hidden - 1:
                    h_f32 = h_f32 * mask         # keep padded rows exactly zero
                h = h_f32.astype(jnp.bfloat16)   # carry activations in bf16
            else:
                # Final plain linear layer (bias kept — no BN after it).
                out_ref[...] = (y + b_out_ref[...]).astype(out_ref.dtype)

    return kernel


# ---------------------------------------------------------------------------
# The MLP module (parameter construction is plain-JAX glue)
# ---------------------------------------------------------------------------
class MLP:
    """JAX/Pallas equivalent of the PyTorch `_MLP` module (forward pass)."""

    def __init__(self, num_layers, input_dim, hidden_dim, output_dim, key):
        if num_layers < 1:
            raise ValueError("number of layers should be positive!")
        self.num_layers = num_layers
        self.linear_or_not = num_layers == 1
        self.input_dim = input_dim
        self.hidden_dim = hidden_dim
        self.output_dim = output_dim

        self.in_pad = _round_up(input_dim, _CONTRACT)   # contraction dim: 16-pad
        self.hid_pad = _round_up(hidden_dim, _LANES)
        self.out_pad = _round_up(output_dim, _LANES)

        def init_linear(k, d_in, d_out, d_in_p, d_out_p):
            # PyTorch nn.Linear default init: U(-1/sqrt(d_in), 1/sqrt(d_in))
            kw, kb = jax.random.split(k)
            bound = 1.0 / (d_in ** 0.5)
            w = jax.random.uniform(kw, (d_out, d_in), jnp.float32, -bound, bound)
            b = jax.random.uniform(kb, (d_out,), jnp.float32, -bound, bound)
            w_t = w.T                                   # (d_in, d_out) reference
            b_r = b.reshape(1, d_out)
            w_p = (jnp.zeros((d_in_p, d_out_p), jnp.float32)
                   .at[:d_in, :d_out].set(w_t)).astype(jnp.bfloat16)
            b_p = jnp.zeros((1, d_out_p), jnp.float32).at[:, :d_out].set(b_r)
            return (w_p, b_p), (w_t, b_r)

        weights = []           # padded bf16 copies streamed by the kernel
        self.hidden_ref = []   # unpadded f32 (W^T, b, gamma, beta) for reference
        if self.linear_or_not:
            (wp, bp), (wr, br) = init_linear(key, input_dim, output_dim,
                                             self.in_pad, self.out_pad)
            weights.append(wp)
            b_out, gamma, beta = bp, None, None
            self.final_ref = (wr, br)
        else:
            dims = [input_dim] + [hidden_dim] * (num_layers - 1) + [output_dim]
            dims_p = [self.in_pad] + [self.hid_pad] * (num_layers - 1) + [self.out_pad]
            keys = jax.random.split(key, num_layers)
            for i in range(num_layers - 1):
                (wp, _bp), (wr, br) = init_linear(keys[i], dims[i], dims[i + 1],
                                                  dims_p[i], dims_p[i + 1])
                weights.append(wp)   # hidden bias dropped in kernel (BN cancels it)
                self.hidden_ref.append(
                    (wr, br,
                     jnp.ones((1, dims[i + 1]), jnp.float32),
                     jnp.zeros((1, dims[i + 1]), jnp.float32)))
            (wp, bp), (wr, br) = init_linear(keys[-1], dims[-2], dims[-1],
                                             dims_p[-2], dims_p[-1])
            weights.append(wp)
            b_out = bp
            gamma = jnp.ones((num_layers - 1, self.hid_pad), jnp.float32)
            beta = jnp.zeros((num_layers - 1, self.hid_pad), jnp.float32)
            self.final_ref = (wr, br)

        # Parameters passed explicitly to the jitted forward (no array closures).
        self.params = {"weights": tuple(weights), "gamma": gamma,
                       "beta": beta, "b_out": b_out}
        self._forward = jax.jit(self._forward_impl)

    # ------------------------------------------------------------------ #
    def _vmem_limit(self, n_pad, max_r, max_c, num_hidden):
        wide = max(self.hid_pad, self.out_pad)
        b = 2 * max_r * max_c * 2                  # streamed weight double buffer
        b += 2 * n_pad * self.in_pad * 2           # x (bf16)
        b += 2 * n_pad * self.out_pad * 4          # output (f32)
        b += 6 * n_pad * wide * 4                  # activation temporaries (f32)
        b += 8 * (num_hidden + 1) * wide * 4       # gamma/beta/bias rows
        b += 8 << 20                               # compiler headroom
        return int(min(b, 64 << 20))               # v7x physical VMEM is 64 MiB

    def _forward_impl(self, params, x):
        n, d_in = x.shape
        n_pad = _round_up(max(n, 1), _SUBLANES)

        # Small pad: batch -> 8-multiple, features -> 16-multiple only (the
        # contraction dim is a sublane axis; it does not need 128 padding).
        x_p = (jnp.zeros((n_pad, self.in_pad), jnp.bfloat16)
               .at[:n, :d_in].set(x.astype(jnp.bfloat16)))

        weights = list(params["weights"])
        w_shapes = tuple(w.shape for w in weights)
        max_r = max(s[0] for s in w_shapes)
        max_c = max(s[1] for s in w_shapes)
        num_hidden = 0 if self.linear_or_not else self.num_layers - 1

        vmem = pl.BlockSpec(memory_space=pltpu.MemorySpace.VMEM)
        hbm = pl.BlockSpec(memory_space=pl.ANY)

        flat = [x_p] + weights
        in_specs = [vmem] + [hbm] * len(weights)
        if num_hidden:
            flat += [params["gamma"], params["beta"]]
            in_specs += [vmem, vmem]
        flat.append(params["b_out"])
        in_specs.append(vmem)

        kernel = _make_mlp_kernel(w_shapes, num_hidden, n, n_pad)

        out_p = pl.pallas_call(
            kernel,
            out_shape=jax.ShapeDtypeStruct((n_pad, self.out_pad), jnp.float32),
            in_specs=in_specs,
            out_specs=vmem,
            scratch_shapes=[
                pltpu.VMEM((2, max_r, max_c), jnp.bfloat16),  # weight double buffer
                pltpu.SemaphoreType.DMA((2,)),
            ],
            compiler_params=pltpu.CompilerParams(
                vmem_limit_bytes=self._vmem_limit(n_pad, max_r, max_c, num_hidden)),
        )(*flat)

        return out_p[:n, :self.output_dim]

    def __call__(self, x):
        return self._forward(self.params, x)


# ---------------------------------------------------------------------------
# Pure-JAX reference (mirrors PyTorch forward exactly, incl. hidden biases;
# matmuls fed in bf16 to match the kernel's MXU precision).
# ---------------------------------------------------------------------------
def _ref_forward(mlp, x):
    def mm(a, w_t):
        return jnp.dot(a.astype(jnp.bfloat16), w_t.astype(jnp.bfloat16),
                       preferred_element_type=jnp.float32)

    if mlp.linear_or_not:
        w_t, b = mlp.final_ref
        return mm(x, w_t) + b

    h = x.astype(jnp.float32)
    for (w_t, b, gamma, beta) in mlp.hidden_ref:
        y = mm(h, w_t) + b
        mean = jnp.mean(y, axis=0, keepdims=True)
        var = jnp.mean((y - mean) ** 2, axis=0, keepdims=True)
        y = gamma * (y - mean) / jnp.sqrt(var + _BN_EPS) + beta
        h = jnp.maximum(y, 0.0)
    w_t, b = mlp.final_ref
    return mm(h, w_t) + b


if __name__ == "__main__":
    key = jax.random.PRNGKey(0)
    kx, kx2, kp, kp2 = jax.random.split(key, 4)

    batch, input_dim, hidden_dim, output_dim, num_layers = 8, 16, 32, 8, 3
    x = jax.random.normal(kx, (batch, input_dim), jnp.float32)

    # Case 1: 3-layer MLP, batch already a multiple of 8.
    mlp = MLP(num_layers, input_dim, hidden_dim, output_dim, kp)
    out = jax.block_until_ready(mlp(x))
    ref = _ref_forward(mlp, x)
    assert out.shape == (batch, output_dim)
    assert jnp.allclose(out, ref, atol=5e-3, rtol=5e-3), "case1 mismatch vs reference"

    # Case 2: batch not a multiple of 8 (exercises masked BN statistics).
    x2 = jax.random.normal(kx2, (6, input_dim), jnp.float32)
    out2 = jax.block_until_ready(mlp(x2))
    ref2 = _ref_forward(mlp, x2)
    assert out2.shape == (6, output_dim)
    assert jnp.allclose(out2, ref2, atol=5e-3, rtol=5e-3), "case2 mismatch vs reference"

    # Case 3: single-linear-layer configuration.
    mlp1 = MLP(1, input_dim, hidden_dim, output_dim, kp2)
    out3 = jax.block_until_ready(mlp1(x))
    ref3 = _ref_forward(mlp1, x)
    assert out3.shape == (batch, output_dim)
    assert jnp.allclose(out3, ref3, atol=5e-3, rtol=5e-3), "case3 mismatch vs reference"

    print("KERNEL_OK")
</pallas_src>

<mosaic_0001>
module attributes {stable_mosaic.version = 11 : i64} {
  func.func @kernel(%arg0: memref<8x16xbf16, #tpu.memory_space<vmem>>, %arg1: memref<16x128xbf16, #tpu.memory_space<any>>, %arg2: memref<128x128xbf16, #tpu.memory_space<any>>, %arg3: memref<128x128xbf16, #tpu.memory_space<any>>, %arg4: memref<2x128xf32, #tpu.memory_space<vmem>>, %arg5: memref<2x128xf32, #tpu.memory_space<vmem>>, %arg6: memref<1x128xf32, #tpu.memory_space<vmem>>, %arg7: memref<8x128xf32, #tpu.memory_space<vmem>>, %arg8: memref<2x128x128xbf16, #tpu.memory_space<vmem>>, %arg9: memref<2x!tpu.dma_semaphore, #tpu.memory_space<semaphore_mem>>) attributes {dimension_semantics = [], scalar_prefetch = 0 : i64, scratch_operands = 2 : i64, tpu.core_type = #tpu.core_type<tc>} {
    %c0_i32 = arith.constant 0 : i32
    %c0_i32_0 = arith.constant 0 : i32
    %c0_i32_1 = arith.constant 0 : i32
    %c0_i32_2 = arith.constant 0 : i32
    %0 = tpu.memref_slice %arg8[%c0_i32, %c0_i32_1, %c0_i32_2] : memref<2x128x128xbf16, #tpu.memory_space<vmem>> -> memref<1x16x128xbf16, #tpu.memory_space<vmem>>
    %1 = tpu.memref_squeeze %0 : memref<1x16x128xbf16, #tpu.memory_space<vmem>> -> memref<16x128xbf16, #tpu.memory_space<vmem>>
    %2 = tpu.memref_slice %arg9[%c0_i32_0] : memref<2x!tpu.dma_semaphore, #tpu.memory_space<semaphore_mem>> -> memref<1x!tpu.dma_semaphore, #tpu.memory_space<semaphore_mem>>
    %3 = tpu.memref_squeeze %2 : memref<1x!tpu.dma_semaphore, #tpu.memory_space<semaphore_mem>> -> memref<!tpu.dma_semaphore, #tpu.memory_space<semaphore_mem>>
    tpu.enqueue_dma source(%arg1 : memref<16x128xbf16, #tpu.memory_space<any>>) target(%1 : memref<16x128xbf16, #tpu.memory_space<vmem>>) target_semaphore(%3 : memref<!tpu.dma_semaphore, #tpu.memory_space<semaphore_mem>>)
    %c0 = arith.constant 0 : index
    %c0_3 = arith.constant 0 : index
    %4 = vector.load %arg0[%c0, %c0_3] : memref<8x16xbf16, #tpu.memory_space<vmem>>, vector<8x16xbf16>
    %c1_i32 = arith.constant 1 : i32
    %c1_i32_4 = arith.constant 1 : i32
    %c0_i32_5 = arith.constant 0 : i32
    %c0_i32_6 = arith.constant 0 : i32
    %5 = tpu.memref_slice %arg8[%c1_i32, %c0_i32_5, %c0_i32_6] : memref<2x128x128xbf16, #tpu.memory_space<vmem>> -> memref<1x128x128xbf16, #tpu.memory_space<vmem>>
    %6 = tpu.memref_squeeze %5 : memref<1x128x128xbf16, #tpu.memory_space<vmem>> -> memref<128x128xbf16, #tpu.memory_space<vmem>>
    %7 = tpu.memref_slice %arg9[%c1_i32_4] : memref<2x!tpu.dma_semaphore, #tpu.memory_space<semaphore_mem>> -> memref<1x!tpu.dma_semaphore, #tpu.memory_space<semaphore_mem>>
    %8 = tpu.memref_squeeze %7 : memref<1x!tpu.dma_semaphore, #tpu.memory_space<semaphore_mem>> -> memref<!tpu.dma_semaphore, #tpu.memory_space<semaphore_mem>>
    tpu.enqueue_dma source(%arg2 : memref<128x128xbf16, #tpu.memory_space<any>>) target(%6 : memref<128x128xbf16, #tpu.memory_space<vmem>>) target_semaphore(%8 : memref<!tpu.dma_semaphore, #tpu.memory_space<semaphore_mem>>)
    %c0_i32_7 = arith.constant 0 : i32
    %c0_i32_8 = arith.constant 0 : i32
    %c0_i32_9 = arith.constant 0 : i32
    %c0_i32_10 = arith.constant 0 : i32
    %9 = tpu.memref_slice %arg8[%c0_i32_7, %c0_i32_9, %c0_i32_10] : memref<2x128x128xbf16, #tpu.memory_space<vmem>> -> memref<1x16x128xbf16, #tpu.memory_space<vmem>>
    %10 = tpu.memref_squeeze %9 : memref<1x16x128xbf16, #tpu.memory_space<vmem>> -> memref<16x128xbf16, #tpu.memory_space<vmem>>
    %11 = tpu.memref_slice %arg9[%c0_i32_8] : memref<2x!tpu.dma_semaphore, #tpu.memory_space<semaphore_mem>> -> memref<1x!tpu.dma_semaphore, #tpu.memory_space<semaphore_mem>>
    %12 = tpu.memref_squeeze %11 : memref<1x!tpu.dma_semaphore, #tpu.memory_space<semaphore_mem>> -> memref<!tpu.dma_semaphore, #tpu.memory_space<semaphore_mem>>
    tpu.wait_dma2 semaphore(%12 : memref<!tpu.dma_semaphore, #tpu.memory_space<semaphore_mem>>) src(%arg1 : memref<16x128xbf16, #tpu.memory_space<any>>) dst(%10 : memref<16x128xbf16, #tpu.memory_space<vmem>>)
    %c0_11 = arith.constant 0 : index
    %c0_12 = arith.constant 0 : index
    %c0_13 = arith.constant 0 : index
    %13 = vector.load %arg8[%c0_11, %c0_12, %c0_13] : memref<2x128x128xbf16, #tpu.memory_space<vmem>>, vector<1x16x128xbf16>
    %14 = vector.shape_cast %13 : vector<1x16x128xbf16> to vector<16x128xbf16>
    %cst = arith.constant dense<0.000000e+00> : vector<8x128xf32>
    %15 = tpu.matmul %4, %14, %cst {dimension_numbers = #tpu.dot_dimension_numbers<[1], [0], [0], [1], [0, 0, 1, 1], [], []>} : vector<8x16xbf16>, vector<16x128xbf16>, vector<8x128xf32> -> vector<8x128xf32>
    %cst_14 = arith.constant dense<0.000000e+00> : vector<128xf32>
    %16 = vector.multi_reduction <add>, %15, %cst_14 [0] : vector<8x128xf32> to vector<128xf32>
    %17 = vector.shape_cast %16 : vector<128xf32> to vector<1x128xf32>
    %18 = arith.mulf %15, %15 : vector<8x128xf32>
    %cst_15 = arith.constant dense<0.000000e+00> : vector<128xf32>
    %19 = vector.multi_reduction <add>, %18, %cst_15 [0] : vector<8x128xf32> to vector<128xf32>
    %20 = vector.shape_cast %19 : vector<128xf32> to vector<1x128xf32>
    %cst_16 = arith.constant 1.250000e-01 : f32
    %21 = vector.broadcast %cst_16 : f32 to vector<1x128xf32>
    %22 = arith.mulf %17, %21 : vector<1x128xf32>
    %cst_17 = arith.constant 1.250000e-01 : f32
    %23 = vector.broadcast %cst_17 : f32 to vector<1x128xf32>
    %24 = arith.mulf %20, %23 : vector<1x128xf32>
    %25 = arith.mulf %22, %22 : vector<1x128xf32>
    %26 = arith.subf %24, %25 : vector<1x128xf32>
    %cst_18 = arith.constant 0.000000e+00 : f32
    %27 = vector.broadcast %cst_18 : f32 to vector<1x128xf32>
    %28 = arith.maximumf %26, %27 : vector<1x128xf32>
    %c0_19 = arith.constant 0 : index
    %c0_20 = arith.constant 0 : index
    %29 = vector.load %arg4[%c0_19, %c0_20] : memref<2x128xf32, #tpu.memory_space<vmem>>, vector<1x128xf32>
    %cst_21 = arith.constant 9.99999974E-6 : f32
    %30 = vector.broadcast %cst_21 : f32 to vector<1x128xf32>
    %31 = arith.addf %28, %30 : vector<1x128xf32>
    %32 = math.rsqrt %31 : vector<1x128xf32>
    %33 = arith.mulf %29, %32 : vector<1x128xf32>
    %c0_22 = arith.constant 0 : index
    %c0_23 = arith.constant 0 : index
    %34 = vector.load %arg5[%c0_22, %c0_23] : memref<2x128xf32, #tpu.memory_space<vmem>>, vector<1x128xf32>
    %35 = arith.mulf %22, %33 : vector<1x128xf32>
    %36 = arith.subf %34, %35 : vector<1x128xf32>
    %37 = vector.broadcast %33 : vector<1x128xf32> to vector<8x128xf32>
    %38 = arith.mulf %15, %37 : vector<8x128xf32>
    %39 = vector.broadcast %36 : vector<1x128xf32> to vector<8x128xf32>
    %40 = arith.addf %38, %39 : vector<8x128xf32>
    %cst_24 = arith.constant 0.000000e+00 : f32
    %41 = vector.broadcast %cst_24 : f32 to vector<8x128xf32>
    %42 = arith.maximumf %40, %41 : vector<8x128xf32>
    %43 = arith.truncf %42 : vector<8x128xf32> to vector<8x128xbf16>
    %c0_i32_25 = arith.constant 0 : i32
    %c0_i32_26 = arith.constant 0 : i32
    %c0_i32_27 = arith.constant 0 : i32
    %c0_i32_28 = arith.constant 0 : i32
    %44 = tpu.memref_slice %arg8[%c0_i32_25, %c0_i32_27, %c0_i32_28] : memref<2x128x128xbf16, #tpu.memory_space<vmem>> -> memref<1x128x128xbf16, #tpu.memory_space<vmem>>
    %45 = tpu.memref_squeeze %44 : memref<1x128x128xbf16, #tpu.memory_space<vmem>> -> memref<128x128xbf16, #tpu.memory_space<vmem>>
    %46 = tpu.memref_slice %arg9[%c0_i32_26] : memref<2x!tpu.dma_semaphore, #tpu.memory_space<semaphore_mem>> -> memref<1x!tpu.dma_semaphore, #tpu.memory_space<semaphore_mem>>
    %47 = tpu.memref_squeeze %46 : memref<1x!tpu.dma_semaphore, #tpu.memory_space<semaphore_mem>> -> memref<!tpu.dma_semaphore, #tpu.memory_space<semaphore_mem>>
    tpu.enqueue_dma source(%arg3 : memref<128x128xbf16, #tpu.memory_space<any>>) target(%45 : memref<128x128xbf16, #tpu.memory_space<vmem>>) target_semaphore(%47 : memref<!tpu.dma_semaphore, #tpu.memory_space<semaphore_mem>>)
    %c1_i32_29 = arith.constant 1 : i32
    %c1_i32_30 = arith.constant 1 : i32
    %c0_i32_31 = arith.constant 0 : i32
    %c0_i32_32 = arith.constant 0 : i32
    %48 = tpu.memref_slice %arg8[%c1_i32_29, %c0_i32_31, %c0_i32_32] : memref<2x128x128xbf16, #tpu.memory_space<vmem>> -> memref<1x128x128xbf16, #tpu.memory_space<vmem>>
    %49 = tpu.memref_squeeze %48 : memref<1x128x128xbf16, #tpu.memory_space<vmem>> -> memref<128x128xbf16, #tpu.memory_space<vmem>>
    %50 = tpu.memref_slice %arg9[%c1_i32_30] : memref<2x!tpu.dma_semaphore, #tpu.memory_space<semaphore_mem>> -> memref<1x!tpu.dma_semaphore, #tpu.memory_space<semaphore_mem>>
    %51 = tpu.memref_squeeze %50 : memref<1x!tpu.dma_semaphore, #tpu.memory_space<semaphore_mem>> -> memref<!tpu.dma_semaphore, #tpu.memory_space<semaphore_mem>>
    tpu.wait_dma2 semaphore(%51 : memref<!tpu.dma_semaphore, #tpu.memory_space<semaphore_mem>>) src(%arg2 : memref<128x128xbf16, #tpu.memory_space<any>>) dst(%49 : memref<128x128xbf16, #tpu.memory_space<vmem>>)
    %c1 = arith.constant 1 : index
    %c0_33 = arith.constant 0 : index
    %c0_34 = arith.constant 0 : index
    %52 = vector.load %arg8[%c1, %c0_33, %c0_34] : memref<2x128x128xbf16, #tpu.memory_space<vmem>>, vector<1x128x128xbf16>
    %53 = vector.shape_cast %52 : vector<1x128x128xbf16> to vector<128x128xbf16>
    %cst_35 = arith.constant dense<0.000000e+00> : vector<8x128xf32>
    %54 = tpu.matmul %43, %53, %cst_35 {dimension_numbers = #tpu.dot_dimension_numbers<[1], [0], [0], [1], [0, 0, 1, 1], [], []>} : vector<8x128xbf16>, vector<128x128xbf16>, vector<8x128xf32> -> vector<8x128xf32>
    %cst_36 = arith.constant dense<0.000000e+00> : vector<128xf32>
    %55 = vector.multi_reduction <add>, %54, %cst_36 [0] : vector<8x128xf32> to vector<128xf32>
    %56 = vector.shape_cast %55 : vector<128xf32> to vector<1x128xf32>
    %57 = arith.mulf %54, %54 : vector<8x128xf32>
    %cst_37 = arith.constant dense<0.000000e+00> : vector<128xf32>
    %58 = vector.multi_reduction <add>, %57, %cst_37 [0] : vector<8x128xf32> to vector<128xf32>
    %59 = vector.shape_cast %58 : vector<128xf32> to vector<1x128xf32>
    %cst_38 = arith.constant 1.250000e-01 : f32
    %60 = vector.broadcast %cst_38 : f32 to vector<1x128xf32>
    %61 = arith.mulf %56, %60 : vector<1x128xf32>
    %cst_39 = arith.constant 1.250000e-01 : f32
    %62 = vector.broadcast %cst_39 : f32 to vector<1x128xf32>
    %63 = arith.mulf %59, %62 : vector<1x128xf32>
    %64 = arith.mulf %61, %61 : vector<1x128xf32>
    %65 = arith.subf %63, %64 : vector<1x128xf32>
    %cst_40 = arith.constant 0.000000e+00 : f32
    %66 = vector.broadcast %cst_40 : f32 to vector<1x128xf32>
    %67 = arith.maximumf %65, %66 : vector<1x128xf32>
    %c1_41 = arith.constant 1 : index
    %c0_42 = arith.constant 0 : index
    %68 = vector.load %arg4[%c1_41, %c0_42] : memref<2x128xf32, #tpu.memory_space<vmem>>, vector<1x128xf32>
    %cst_43 = arith.constant 9.99999974E-6 : f32
    %69 = vector.broadcast %cst_43 : f32 to vector<1x128xf32>
    %70 = arith.addf %67, %69 : vector<1x128xf32>
    %71 = math.rsqrt %70 : vector<1x128xf32>
    %72 = arith.mulf %68, %71 : vector<1x128xf32>
    %c1_44 = arith.constant 1 : index
    %c0_45 = arith.constant 0 : index
    %73 = vector.load %arg5[%c1_44, %c0_45] : memref<2x128xf32, #tpu.memory_space<vmem>>, vector<1x128xf32>
    %74 = arith.mulf %61, %72 : vector<1x128xf32>
    %75 = arith.subf %73, %74 : vector<1x128xf32>
    %76 = vector.broadcast %72 : vector<1x128xf32> to vector<8x128xf32>
    %77 = arith.mulf %54, %76 : vector<8x128xf32>
    %78 = vector.broadcast %75 : vector<1x128xf32> to vector<8x128xf32>
    %79 = arith.addf %77, %78 : vector<8x128xf32>
    %cst_46 = arith.constant 0.000000e+00 : f32
    %80 = vector.broadcast %cst_46 : f32 to vector<8x128xf32>
    %81 = arith.maximumf %79, %80 : vector<8x128xf32>
    %82 = arith.truncf %81 : vector<8x128xf32> to vector<8x128xbf16>
    %c0_i32_47 = arith.constant 0 : i32
    %c0_i32_48 = arith.constant 0 : i32
    %c0_i32_49 = arith.constant 0 : i32
    %c0_i32_50 = arith.constant 0 : i32
    %83 = tpu.memref_slice %arg8[%c0_i32_47, %c0_i32_49, %c0_i32_50] : memref<2x128x128xbf16, #tpu.memory_space<vmem>> -> memref<1x128x128xbf16, #tpu.memory_space<vmem>>
    %84 = tpu.memref_squeeze %83 : memref<1x128x128xbf16, #tpu.memory_space<vmem>> -> memref<128x128xbf16, #tpu.memory_space<vmem>>
    %85 = tpu.memref_slice %arg9[%c0_i32_48] : memref<2x!tpu.dma_semaphore, #tpu.memory_space<semaphore_mem>> -> memref<1x!tpu.dma_semaphore, #tpu.memory_space<semaphore_mem>>
    %86 = tpu.memref_squeeze %85 : memref<1x!tpu.dma_semaphore, #tpu.memory_space<semaphore_mem>> -> memref<!tpu.dma_semaphore, #tpu.memory_space<semaphore_mem>>
    tpu.wait_dma2 semaphore(%86 : memref<!tpu.dma_semaphore, #tpu.memory_space<semaphore_mem>>) src(%arg3 : memref<128x128xbf16, #tpu.memory_space<any>>) dst(%84 : memref<128x128xbf16, #tpu.memory_space<vmem>>)
    %c0_51 = arith.constant 0 : index
    %c0_52 = arith.constant 0 : index
    %c0_53 = arith.constant 0 : index
    %87 = vector.load %arg8[%c0_51, %c0_52, %c0_53] : memref<2x128x128xbf16, #tpu.memory_space<vmem>>, vector<1x128x128xbf16>
    %88 = vector.shape_cast %87 : vector<1x128x128xbf16> to vector<128x128xbf16>
    %cst_54 = arith.constant dense<0.000000e+00> : vector<8x128xf32>
    %89 = tpu.matmul %82, %88, %cst_54 {dimension_numbers = #tpu.dot_dimension_numbers<[1], [0], [0], [1], [0, 0, 1, 1], [], []>} : vector<8x128xbf16>, vector<128x128xbf16>, vector<8x128xf32> -> vector<8x128xf32>
    %c0_55 = arith.constant 0 : index
    %c0_56 = arith.constant 0 : index
    %90 = vector.load %arg6[%c0_55, %c0_56] : memref<1x128xf32, #tpu.memory_space<vmem>>, vector<1x128xf32>
    %91 = vector.broadcast %90 : vector<1x128xf32> to vector<8x128xf32>
    %92 = arith.addf %89, %91 : vector<8x128xf32>
    %c0_57 = arith.constant 0 : index
    %c0_58 = arith.constant 0 : index
    %93 = vector.load %arg7[%c0_57, %c0_58] : memref<8x128xf32, #tpu.memory_space<vmem>>, vector<8x128xf32>
    tpu.vector_store %arg7[%c0_57, %c0_58], %92 {strides = array<i32>} : memref<8x128xf32, #tpu.memory_space<vmem>>, vector<8x128xf32>,
    return
  }
}

</mosaic_0001>

<llo_original>
// kernel: _forward_impl.1
$region0: #{_forward_impl.1}
  #allocation0 [shape = 'u32[]', space=smem, size = 0x4, offset = 0x4, fixed_abs, tag = 'smem constant byte address 0x4 - core index']
  #allocation1 [shape = 'u32[144,128]{1,0:T(1,128)}', space=vmem, size = 0x12000, scoped, tag = 'internal scratch']
  #allocation2 [shape = 'bf16[2,128,128]{2,1,0:T(16,128)(2,1)}', space=vmem, size = 0x10000, scoped, tag = 'scratch operand']
  #allocation3 [shape = 's32[2]{0}', space=sflag, size = 0x8, scoped, tag = 'scratch operand']
  #allocation6 [shape = 's32[]', space=sflag, size = 0x4, offset = 0, fixed_abs, tag = 'sflag constant byte address 0x0 - dummy sync flag']
  #allocation7 [shape = 's32[]', space=sflag, size = 0x4, offset = 0, fixed_abs, tag = 'sflag constant byte address 0x0 - dummy sync flag']
  #allocation8 [shape = 's32[]', space=sflag, size = 0x4, offset = 0, fixed_abs, tag = 'sflag constant byte address 0x0 - dummy sync flag']
  #allocation9 [shape = 'u32[]', space=smem, size = 0x4, offset = 0x44, fixed_abs, tag = 'smem constant byte address 0x44 - assertion arg 0']
  #allocation10 [shape = 'u32[]', space=smem, size = 0x4, offset = 0x48, fixed_abs, tag = 'smem constant byte address 0x48 - assertion arg 1']
  #allocation11 [shape = 's32[]', space=sflag, size = 0x4, offset = 0, fixed_abs, tag = 'sflag constant byte address 0x0 - dummy sync flag']
  #allocation12 [shape = 's32[]', space=sflag, size = 0x4, offset = 0, fixed_abs, tag = 'sflag constant byte address 0x0 - dummy sync flag']
  %s0 = inlined_call_operand.vmem [shape: bf16[8,16], index: 0, kind: input, shape index: {}]
  %s1 = inlined_call_operand.vmem [shape: bf16[16,128], index: 1, kind: input, shape index: {}]
  %s2 = inlined_call_operand.hbm [shape: bf16[128,128], index: 2, kind: input, shape index: {}]
  %s3 = inlined_call_operand.hbm [shape: bf16[128,128], index: 3, kind: input, shape index: {}]
  %s4 = inlined_call_operand.vmem [shape: f32[2,128], index: 4, kind: input, shape index: {}]
  %s5 = inlined_call_operand.vmem [shape: f32[2,128], index: 5, kind: input, shape index: {}]
  %s6 = inlined_call_operand.vmem [shape: f32[1,128], index: 6, kind: input, shape index: {}]
  %s7 = inlined_call_operand.hbm [shape: f32[8,128], index: 7, kind: output, shape index: {}]
  %s8 = sld [smem:[#allocation0]]
  $region68: #{_forward_impl.1} parent=0
    _
  %s10 = ssub.s32 1, %s8
  %s11 = scalar_select 0, %s10, %s8
  $region1: #{_forward_impl.1} parent=0
    #allocation4 [shape = 'u8[4096]{0}', space=vmem, size = 0x1000, scoped, tag = 'output window, operand 0, single buffered']
    #allocation5 [shape = 's32[1]{0}', space=sflag, size = 0x4, scoped, tag = 'scoped memory for _forward_impl.1']
    %12 = vsyncpa [#allocation5], 0
    // Predicated region
    $region2: #{_forward_impl.1} parent=1 // pred_check
      _
    $region3: #{_forward_impl.1} parent=1 // pred_check_branch
      %14 = sbr.rel (0) target = $region5
    $region4: #{_forward_impl.1} parent=1 // pred_region
      _
    $region5: #{_forward_impl.1} parent=1 // pred_fallthru
      _
    // Predicated region
    $region6: #{_forward_impl.1} parent=1 // pred_check
      _
    $region7: #{_forward_impl.1} parent=1 // pred_check_branch
      %16 = sbr.rel (0) target = $region9
    $region8: #{_forward_impl.1} parent=1 // pred_region
      _
    $region9: #{_forward_impl.1} parent=1 // pred_fallthru
      _
    // Predicated region
    $region10: #{_forward_impl.1} parent=1 // pred_check
      _
    $region11: #{_forward_impl.1} parent=1 // pred_check_branch
      %18 = sbr.rel (0) target = $region13
    $region12: #{_forward_impl.1} parent=1 // pred_region
      _
    $region13: #{_forward_impl.1} parent=1 // pred_fallthru
      _
    // Predicated region
    $region14: #{_forward_impl.1} parent=1 // pred_check
      _
    $region15: #{_forward_impl.1} parent=1 // pred_check_branch
      %20 = sbr.rel (0) target = $region17
    $region16: #{_forward_impl.1} parent=1 // pred_region
      _
    $region17: #{_forward_impl.1} parent=1 // pred_fallthru
      _
    %p23 = scmp.lt.u32.totalorder 8, 8
    %p24 = pneg %p23
    // Predicated region
    $region18: #{_forward_impl.1} parent=1 // pred_check
      _
    $region19: #{_forward_impl.1} parent=1 // pred_check_branch
      %26 = sbr.rel (%p23) target = $region21
    $region20: #{_forward_impl.1} parent=1 // pred_region
      %s41 = sand.u32 8, 7
      %p42 = scmp.eq.s32.totalorder %s41, 0
      // Predicated region
      $region33: #{_forward_impl.1} parent=20 // pred_check
        %p43 = pneg %p42
      $region34: #{_forward_impl.1} parent=20 // pred_check_branch
        %45 = sbr.rel (%p43) target = $region36
      $region35: #{_forward_impl.1} parent=20 // pred_region
        loop: start=0, step=1, limit=1
        $region37: #{_forward_impl.1} parent=35 // loop_pre_header
          _
        $region38: #{_forward_impl.1} parent=35 // loop_header
          %s47 = sphi 0, %s51
          %p48 = scmp.ge.s32.totalorder %s47, 1
          %s52 = sphi %s1, %s1
          %s53 = sphi [#allocation2], [#allocation2]
        $region39: #{_forward_impl.1} parent=35 // loop_header_branch
          %50 = sbr.rel (%p48) target = $region43
        $region40: #{_forward_impl.1} parent=35 // loop_body
          %v54 = vld [vmem:[%s52] sm:$0xff]
          %55 = vst [vmem:[%s53] sm:$0xff] %v54
        $region41: #{_forward_impl.1} parent=35 // loop_footer
          %s51 = sadd.s32 1, %s47
        $region42: #{_forward_impl.1} parent=35 // loop_footer_branch
          %46 = sbr.rel target = $region38
        $region43: #{_forward_impl.1} parent=35 // loop_exit
          _
      $region36: #{_forward_impl.1} parent=20 // pred_fallthru
        _
      %p56 = pneg %p42
      // Predicated region
      $region44: #{_forward_impl.1} parent=20 // pred_check
        _
      $region45: #{_forward_impl.1} parent=20 // pred_check_branch
        %58 = sbr.rel (%p42) target = $region47
      $region46: #{_forward_impl.1} parent=20 // pred_region
        %s59 = sand.u32 8, 7
      $region47: #{_forward_impl.1} parent=20 // pred_fallthru
        _
    $region21: #{_forward_impl.1} parent=1 // pred_fallthru
      _
    // Predicated region
    $region22: #{_forward_impl.1} parent=1 // pred_check
      %p27 = pneg %p23
    $region23: #{_forward_impl.1} parent=1 // pred_check_branch
      %29 = sbr.rel (%p27) target = $region25
    $region24: #{_forward_impl.1} parent=1 // pred_region
      %s30 = sshllo.u32 0, 8
      loop: start=0, step=1, limit=1
      $region26: #{_forward_impl.1} parent=24 // loop_pre_header
        _
      $region27: #{_forward_impl.1} parent=24 // loop_header
        %s32 = sphi 0, %s36
        %p33 = scmp.ge.s32.totalorder %s32, 1
        %s37 = sphi %s1, %s1
        %s38 = sphi [#allocation2], [#allocation2]
      $region28: #{_forward_impl.1} parent=24 // loop_header_branch
        %35 = sbr.rel (%p33) target = $region32
      $region29: #{_forward_impl.1} parent=24 // loop_body
        %v39 = vld [vmem:[%s37] sm:%s30]
        %40 = vst [vmem:[%s38] sm:%s30] %v39
      $region30: #{_forward_impl.1} parent=24 // loop_footer
        %s36 = sadd.s32 1, %s32
      $region31: #{_forward_impl.1} parent=24 // loop_footer_branch
        %31 = sbr.rel target = $region27
      $region32: #{_forward_impl.1} parent=24 // loop_exit
        _
    $region25: #{_forward_impl.1} parent=1 // pred_fallthru
      _
    // Predicated region
    $region48: #{_forward_impl.1} parent=1 // pred_check
      _
    $region49: #{_forward_impl.1} parent=1 // pred_check_branch
      %62 = sbr.rel (0) target = $region51
    $region50: #{_forward_impl.1} parent=1 // pred_region
      %63 = vsyncadd [#allocation3], 128
    $region51: #{_forward_impl.1} parent=1 // pred_fallthru
      _
    %v64 = vld [vmem:[%s0] sm:$0xf]
    %s65 = scalar_lea.vmem [#allocation2], 64
    %s66 = scalar_lea.sflag [#allocation3], 1
    // Predicated region
    $region52: #{_forward_impl.1} parent=1 // pred_check
      _
    $region53: #{_forward_impl.1} parent=1 // pred_check_branch
      %68 = sbr.rel target = $region55
    $region54: #{_forward_impl.1} parent=1 // pred_region
      %69 = sst [smem:[#allocation9]] [#allocation8]
      %70 = sst [smem:[#allocation10]] [#allocation7]
    $region55: #{_forward_impl.1} parent=1 // pred_fallthru
      _
    %72 = shalt.err (0)
    %s74 = sshll.u32 %s65, 4
    %s75 = int_to_ptr.vmem [resolvable:$true] %s74
    %77 = dma.hbm_to_vmem [thread:$0]  %s2, 1024, %s75, %s66
    %s78 = smul.u32 4, 2
    %s79 = smul.u32 %s78, 1
    %s80 = sshll.u32 %s79, 4
    %81 = dma.done [#allocation3], %s80
    %v82 = vld [vmem:[#allocation2] sm:$0xff]
    %vm83 = vcmask 130048
    %v85 = vsel %vm83, %v64, 0
    %87 = vmatprep.subr.bf16.mxu0 0
    %88 = vmatpush1.bf16.msra.mxu0 %v82
    %89 = vmatprep.subr.bf16.mxu0 0
    %90 = vmatpush1.bf16.msra.mxu0 0
    %91 = vmatprep.subr.bf16.mxu0 0
    %92 = vmatpush1.bf16.msra.mxu0 0
    %93 = vmatprep.subr.bf16.mxu0 0
    %94 = vmatpush1.bf16.msra.mxu0 0
    %95 = vmatprep.subr.bf16.mxu0 0
    %96 = vmatpush1.bf16.msra.mxu0 0
    %97 = vmatprep.subr.bf16.mxu0 0
    %98 = vmatpush1.bf16.msra.mxu0 0
    %99 = vmatprep.subr.bf16.mxu0 0
    %100 = vmatpush1.bf16.msra.mxu0 0
    %101 = vmatprep.subr.bf16.mxu0 0
    %102 = vmatpush1.bf16.msra.mxu0 0
    %103 = vmatprep.subr.bf16.mxu0 0
    %104 = vmatpush1.bf16.msra.mxu0 0
    %105 = vmatprep.subr.bf16.mxu0 0
    %106 = vmatpush1.bf16.msra.mxu0 0
    %107 = vmatprep.subr.bf16.mxu0 0
    %108 = vmatpush1.bf16.msra.mxu0 0
    %109 = vmatprep.subr.bf16.mxu0 0
    %110 = vmatpush1.bf16.msra.mxu0 0
    %111 = vmatprep.subr.bf16.mxu0 0
    %112 = vmatpush1.bf16.msra.mxu0 0
    %113 = vmatprep.subr.bf16.mxu0 0
    %114 = vmatpush1.bf16.msra.mxu0 0
    %115 = vmatprep.subr.bf16.mxu0 0
    %116 = vmatpush1.bf16.msra.mxu0 0
    %117 = vmatprep.subr.bf16.mxu0 0
    %118 = vmatpush1.bf16.msra.mxu0 0
    %119 = vmatprep.mubr.bf16.mxu0 0
    %120 = vmatmul.mubr.bf16.gmra.mrb[0].mxu0 %v85
    %v121 = vpop.f32.mrb[0].mxu0
    %v122 = vadd.f32 0.0, %v121
    %v123 = vpop.f32.mrb[0].mxu0
    %v124 = vpop.f32.mrb[0].mxu0
    %v125 = vpop.f32.mrb[0].mxu0
    %126 = vdwg.mxu0
    %v127 = vrot.slane %v122, 4
    %v128 = vadd.f32 %v122, %v127
    %v129 = vrot.slane %v128, 2
    %v130 = vadd.f32 %v128, %v129
    %v131 = vrot.slane %v130, 1
    %v132 = vadd.f32 %v130, %v131
    %v133 = vmul.f32 %v122, %v122
    %v134 = vrot.slane %v133, 4
    %v135 = vadd.f32 %v133, %v134
    %v136 = vrot.slane %v135, 2
    %v137 = vadd.f32 %v135, %v136
    %v138 = vrot.slane %v137, 1
    %v139 = vadd.f32 %v137, %v138
    %v140 = vmul.f32 %v132, 0.125
    %v141 = vmul.f32 %v139, 0.125
    %v142 = vmul.f32 %v140, %v140
    %v143 = vsub.f32 %v141, %v142
    %v144 = vmax.f32 %v143, 0.0
    %v145 = vld [vmem:[%s4] sm:$0x1]
    %v146 = vadd.f32 %v144, 1e-05
    %v147 = vrsqrt.pop %v146
    %v148 = vmul.f32 %v145, %v147
    %v149 = vld [vmem:[%s5] sm:$0x1]
    %v150 = vmul.f32 %v140, %v148
    %v151 = vsub.f32 %v149, %v150
    %v152 = vlaneseq
    %v153 = vshrl.u32 %v152, 7
    %v154 = vsub.s32 0, %v153
    %v155 = vrot.slane %v148, %v154
    %v156 = vmul.f32 %v122, %v155
    %v157 = vlaneseq
    %v158 = vshrl.u32 %v157, 7
    %v159 = vsub.s32 0, %v158
    %v160 = vrot.slane %v151, %v159
    %v161 = vadd.f32 %v156, %v160
    %v162 = vmax.f32 %v161, 0.0
    %v163 = vpack.c.bf16 %v162, %v162
    // Predicated region
    $region56: #{_forward_impl.1} parent=1 // pred_check
      _
    $region57: #{_forward_impl.1} parent=1 // pred_check_branch
      %165 = sbr.rel target = $region59
    $region58: #{_forward_impl.1} parent=1 // pred_region
      %166 = sst [smem:[#allocation9]] [#allocation12]
      %167 = sst [smem:[#allocation10]] [#allocation11]
    $region59: #{_forward_impl.1} parent=1 // pred_fallthru
      _
    %169 = shalt.err (0)
    %s171 = sshll.u32 [#allocation2], 4
    %s172 = int_to_ptr.vmem [resolvable:$true] %s171
    %174 = dma.hbm_to_vmem [thread:$0]  %s3, 1024, %s172, [#allocation3]
    %s175 = smul.u32 4, 16
    %s176 = smul.u32 %s175, 1
    %s177 = sshll.u32 %s176, 4
    %178 = dma.done %s66, %s177
    %v179 = vld [vmem:[%s65] sm:$0xff]
    %v180 = vld [vmem:[%s65 + $0x8] sm:$0xff]
    %v181 = vld [vmem:[%s65 + $0x10] sm:$0xff]
    %v182 = vld [vmem:[%s65 + $0x18] sm:$0xff]
    %v183 = vld [vmem:[%s65 + $0x20] sm:$0xff]
    %v184 = vld [vmem:[%s65 + $0x28] sm:$0xff]
    %v185 = vld [vmem:[%s65 + $0x30] sm:$0xff]
    %v186 = vld [vmem:[%s65 + $0x38] sm:$0xff]
    %187 = vmatprep.subr.bf16.mxu0 0
    %188 = vmatpush1.bf16.msra.mxu0 %v179
    %189 = vmatprep.subr.bf16.mxu0 0
    %190 = vmatpush1.bf16.msra.mxu0 %v180
    %191 = vmatprep.subr.bf16.mxu0 0
    %192 = vmatpush1.bf16.msra.mxu0 %v181
    %193 = vmatprep.subr.bf16.mxu0 0
    %194 = vmatpush1.bf16.msra.mxu0 %v182
    %195 = vmatprep.subr.bf16.mxu0 0
    %196 = vmatpush1.bf16.msra.mxu0 %v183
    %197 = vmatprep.subr.bf16.mxu0 0
    %198 = vmatpush1.bf16.msra.mxu0 %v184
    %199 = vmatprep.subr.bf16.mxu0 0
    %200 = vmatpush1.bf16.msra.mxu0 %v185
    %201 = vmatprep.subr.bf16.mxu0 0
    %202 = vmatpush1.bf16.msra.mxu0 %v186
    %203 = vmatprep.subr.bf16.mxu0 0
    %204 = vmatpush1.bf16.msra.mxu0 0
    %205 = vmatprep.subr.bf16.mxu0 0
    %206 = vmatpush1.bf16.msra.mxu0 0
    %207 = vmatprep.subr.bf16.mxu0 0
    %208 = vmatpush1.bf16.msra.mxu0 0
    %209 = vmatprep.subr.bf16.mxu0 0
    %210 = vmatpush1.bf16.msra.mxu0 0
    %211 = vmatprep.subr.bf16.mxu0 0
    %212 = vmatpush1.bf16.msra.mxu0 0
    %213 = vmatprep.subr.bf16.mxu0 0
    %214 = vmatpush1.bf16.msra.mxu0 0
    %215 = vmatprep.subr.bf16.mxu0 0
    %216 = vmatpush1.bf16.msra.mxu0 0
    %217 = vmatprep.subr.bf16.mxu0 0
    %218 = vmatpush1.bf16.msra.mxu0 0
    %219 = vmatprep.mubr.bf16.mxu0 0
    %220 = vmatmul.mubr.bf16.gmra.mrb[0].mxu0 %v163
    %v221 = vpop.f32.mrb[0].mxu0
    %v222 = vadd.f32 0.0, %v221
    %v223 = vpop.f32.mrb[0].mxu0
    %v224 = vpop.f32.mrb[0].mxu0
    %v225 = vpop.f32.mrb[0].mxu0
    %226 = vdwg.mxu0
    %v227 = vrot.slane %v222, 4
    %v228 = vadd.f32 %v222, %v227
    %v229 = vrot.slane %v228, 2
    %v230 = vadd.f32 %v228, %v229
    %v231 = vrot.slane %v230, 1
    %v232 = vadd.f32 %v230, %v231
    %v233 = vmul.f32 %v222, %v222
    %v234 = vrot.slane %v233, 4
    %v235 = vadd.f32 %v233, %v234
    %v236 = vrot.slane %v235, 2
    %v237 = vadd.f32 %v235, %v236
    %v238 = vrot.slane %v237, 1
    %v239 = vadd.f32 %v237, %v238
    %v240 = vmul.f32 %v232, 0.125
    %v241 = vmul.f32 %v239, 0.125
    %v242 = vmul.f32 %v240, %v240
    %v243 = vsub.f32 %v241, %v242
    %v244 = vmax.f32 %v243, 0.0
    %v245 = vld [vmem:[%s4 + $0x1] sm:$0x1]
    %v246 = vadd.f32 %v244, 1e-05
    %v247 = vrsqrt.pop %v246
    %v248 = vmul.f32 %v245, %v247
    %v249 = vld [vmem:[%s5 + $0x1] sm:$0x1]
    %v250 = vmul.f32 %v240, %v248
    %v251 = vsub.f32 %v249, %v250
    %v252 = vlaneseq
    %v253 = vshrl.u32 %v252, 7
    %v254 = vsub.s32 0, %v253
    %v255 = vrot.slane %v248, %v254
    %v256 = vmul.f32 %v222, %v255
    %v257 = vlaneseq
    %v258 = vshrl.u32 %v257, 7
    %v259 = vsub.s32 0, %v258
    %v260 = vrot.slane %v251, %v259
    %v261 = vadd.f32 %v256, %v260
    %v262 = vmax.f32 %v261, 0.0
    %v263 = vpack.c.bf16 %v262, %v262
    %s264 = sshll.u32 %s176, 4
    %265 = dma.done [#allocation3], %s264
    %v266 = vld [vmem:[#allocation2] sm:$0xff]
    %v267 = vld [vmem:[#allocation2 + $0x8] sm:$0xff]
    %v268 = vld [vmem:[#allocation2 + $0x10] sm:$0xff]
    %v269 = vld [vmem:[#allocation2 + $0x18] sm:$0xff]
    %v270 = vld [vmem:[#allocation2 + $0x20] sm:$0xff]
    %v271 = vld [vmem:[#allocation2 + $0x28] sm:$0xff]
    %v272 = vld [vmem:[#allocation2 + $0x30] sm:$0xff]
    %v273 = vld [vmem:[#allocation2 + $0x38] sm:$0xff]
    %v274 = vld [vmem:[%s6] sm:$0x1]
    %v276 = vlaneseq
    %v277 = vshrl.u32 %v276, 7
    %v278 = vsub.s32 0, %v277
    %v279 = vrot.slane %v274, %v278
    %281 = vmatprep.subr.bf16.mxu0 0
    %282 = vmatpush1.bf16.msra.mxu0 %v266
    %283 = vmatprep.subr.bf16.mxu0 0
    %284 = vmatpush1.bf16.msra.mxu0 %v267
    %285 = vmatprep.subr.bf16.mxu0 0
    %286 = vmatpush1.bf16.msra.mxu0 %v268
    %287 = vmatprep.subr.bf16.mxu0 0
    %288 = vmatpush1.bf16.msra.mxu0 %v269
    %289 = vmatprep.subr.bf16.mxu0 0
    %290 = vmatpush1.bf16.msra.mxu0 %v270
    %291 = vmatprep.subr.bf16.mxu0 0
    %292 = vmatpush1.bf16.msra.mxu0 %v271
    %293 = vmatprep.subr.bf16.mxu0 0
    %294 = vmatpush1.bf16.msra.mxu0 %v272
    %295 = vmatprep.subr.bf16.mxu0 0
    %296 = vmatpush1.bf16.msra.mxu0 %v273
    %297 = vmatprep.subr.bf16.mxu0 0
    %298 = vmatpush1.bf16.msra.mxu0 0
    %299 = vmatprep.subr.bf16.mxu0 0
    %300 = vmatpush1.bf16.msra.mxu0 0
    %301 = vmatprep.subr.bf16.mxu0 0
    %302 = vmatpush1.bf16.msra.mxu0 0
    %303 = vmatprep.subr.bf16.mxu0 0
    %304 = vmatpush1.bf16.msra.mxu0 0
    %305 = vmatprep.subr.bf16.mxu0 0
    %306 = vmatpush1.bf16.msra.mxu0 0
    %307 = vmatprep.subr.bf16.mxu0 0
    %308 = vmatpush1.bf16.msra.mxu0 0
    %309 = vmatprep.subr.bf16.mxu0 0
    %310 = vmatpush1.bf16.msra.mxu0 0
    %311 = vmatprep.subr.bf16.mxu0 0
    %312 = vmatpush1.bf16.msra.mxu0 0
    %313 = vmatprep.mubr.bf16.mxu0 0
    %314 = vmatmul.mubr.bf16.gmra.mrb[0].mxu0 %v263
    %v315 = vpop.f32.mrb[0].mxu0
    %v316 = vadd.f32 %v279, %v315
    %v317 = vpop.f32.mrb[0].mxu0
    %v318 = vpop.f32.mrb[0].mxu0
    %v319 = vpop.f32.mrb[0].mxu0
    %320 = vdwg.mxu0
    %321 = vst [vmem:[#allocation4] sm:$0xff] %v316
    // Predicated region
    $region60: #{_forward_impl.1} parent=1 // pred_check
      _
    $region61: #{_forward_impl.1} parent=1 // pred_check_branch
      %323 = sbr.rel (0) target = $region63
    $region62: #{_forward_impl.1} parent=1 // pred_region
      %s325 = ssub.s32 128, 128
      %326 = vsyncadd [#allocation5], %s325
      %s328 = sshll.u32 [#allocation4], 4
      %s329 = int_to_ptr.vmem [resolvable:$true] %s328
      %331 = dma.vmem_to_hbm [thread:$0]  %s329, 128, %s7, [#allocation5]
    $region63: #{_forward_impl.1} parent=1 // pred_fallthru
      _
    // Predicated region
    $region64: #{_forward_impl.1} parent=1 // pred_check
      _
    $region65: #{_forward_impl.1} parent=1 // pred_check_branch
      %333 = sbr.rel (0) target = $region67
    $region66: #{_forward_impl.1} parent=1 // pred_region
      %334 = dma.done [#allocation5], 128
    $region67: #{_forward_impl.1} parent=1 // pred_fallthru
      _
    %335 = vsyncpa [#allocation5], 1
  %336 = vsyncmov [#allocation3]
  %s337 = vpop.sfrf %336
  %p338 = scmp.eq.s32.totalorder %s337, 0
  %p339 = pneg %p338
  %341 = shalt.err (%p339)
  %s342 = scalar_lea.sflag [#allocation3], 1
  %343 = vsyncmov %s342
  %s344 = vpop.sfrf %343
  %p345 = scmp.eq.s32.totalorder %s344, 0
  %p346 = pneg %p345
  %348 = shalt.err (%p346)

</llo_original>
